<compile_context>
chip_gen: v6e
topology: v6e:2x2x1
jax: 0.10.0
libtpu: 0.0.40
codegen_flags: <defaults>
</compile_context>

<pallas_src>
import functools

import jax
import jax.numpy as jnp
from jax.experimental import pallas as pl
from jax.experimental.pallas import tpu as pltpu


_VMEM_LIMIT = 32 * 1024 * 1024   # explicit scoped-VMEM cap; safe on v5e/v6e/v7x
# Set to jnp.bfloat16 on v6e/v7x for ~2x MXU throughput and half the DMA bytes
# (f32 accumulation preserved via preferred_element_type). Kept f32 by default to
# match PyTorch numerics exactly; LSTM elementwise math stays f32 regardless (v5e).
_MXU_DTYPE = jnp.float32


# ---------------------------------------------------------------------------
# Small helpers
# ---------------------------------------------------------------------------

def _round_up(x, m):
    return (x + m - 1) // m * m


def _row_tile(m, max_tile=512):
    """Row-tile size: big enough to pipeline well, small enough for v7x VMEM."""
    return min(max_tile, _round_up(m, 8))


def _pad_rows(x, tile):
    m = x.shape[0]
    mp = _round_up(m, tile)
    if mp != m:
        pad = [(0, mp - m)] + [(0, 0)] * (x.ndim - 1)
        x = jnp.pad(x, pad)
    return x, m


def _mosaic(dims):
    return pltpu.CompilerParams(dimension_semantics=dims,
                                vmem_limit_bytes=_VMEM_LIMIT)


# ---------------------------------------------------------------------------
# Pallas kernels
# ---------------------------------------------------------------------------

def _matmul_scale_bias_relu_kernel(x_ref, w_ref, s_ref, b_ref, o_ref):
    """out = relu((x @ w) * scale + bias) -- conv(im2col) + BN(eval) + ReLU fused."""
    acc = jnp.dot(x_ref[...], w_ref[...], preferred_element_type=jnp.float32)
    o_ref[...] = jnp.maximum(acc * s_ref[...] + b_ref[...], 0.0).astype(o_ref.dtype)


def _linear_kernel(x_ref, w_ref, b_ref, o_ref, *, relu):
    acc = jnp.dot(x_ref[...], w_ref[...], preferred_element_type=jnp.float32) + b_ref[...]
    if relu:
        acc = jnp.maximum(acc, 0.0)
    o_ref[...] = acc.astype(o_ref.dtype)


def _mlp_head_kernel(x_ref, w1_ref, b1_ref, w2_ref, b2_ref, o_ref, h_scr):
    """FC head: Linear -> ReLU -> (Dropout=identity) -> Linear, vocab (N) tiled.

    The fc1 hidden tile is computed once per row-tile (at the first vocab tile)
    and kept resident in VMEM scratch across the vocab grid axis.
    """
    @pl.when(pl.program_id(1) == 0)
    def _():
        h = jnp.dot(x_ref[...], w1_ref[...], preferred_element_type=jnp.float32) + b1_ref[...]
        h_scr[...] = jnp.maximum(h, 0.0)
    acc = jnp.dot(h_scr[...].astype(w2_ref.dtype), w2_ref[...],
                  preferred_element_type=jnp.float32) + b2_ref[...]
    o_ref[...] = acc.astype(o_ref.dtype)


def _window_max_kernel(w_ref, o_ref):
    """Max-pool: k*k taps as a grid reduction axis; running max into the output block."""
    j = pl.program_id(1)
    cur = w_ref[...]

    @pl.when(j == 0)
    def _():
        o_ref[...] = cur

    @pl.when(j > 0)
    def _():
        o_ref[...] = jnp.maximum(o_ref[...], cur)


def _gather_kernel(ids_ref, row_ref, o_ref):
    """Embedding row gather: scalar-prefetched ids drive the table BlockSpec index_map."""
    del ids_ref
    o_ref[...] = row_ref[...]


def _sigmoid(x):
    return 1.0 / (1.0 + jnp.exp(-x))


def _lstm_step_kernel(preact_ref, lens_ref, h0_ref, c0_ref, whh_ref,
                      out_ref, h_scr, c_scr, *, hidden):
    """One LSTM timestep per grid iteration.

    preact_ref holds the precomputed x_t @ W_ih^T + (b_ih + b_hh) for this timestep,
    so the sequential path is a single (B,H) @ (H,4H) matmul plus VPU/EUP gate math.
    Hidden/cell state carried in VMEM scratch (f32 on all chips).
    """
    t = pl.program_id(0)

    @pl.when(t == 0)
    def _init():
        h_scr[...] = h0_ref[...].astype(jnp.float32)
        c_scr[...] = c0_ref[...].astype(jnp.float32)

    h = h_scr[...]
    c = c_scr[...]
    gates = preact_ref[...] + jnp.dot(h, whh_ref[...], preferred_element_type=jnp.float32)

    i = _sigmoid(gates[:, 0 * hidden:1 * hidden])
    f = _sigmoid(gates[:, 1 * hidden:2 * hidden])
    g = jnp.tanh(gates[:, 2 * hidden:3 * hidden])
    o = _sigmoid(gates[:, 3 * hidden:4 * hidden])

    c_new = f * c + i * g
    h_new = o * jnp.tanh(c_new)

    h_scr[...] = h_new
    c_scr[...] = c_new
    # pack/pad_packed semantics: zero output at padded timesteps (t >= length[b])
    mask = lens_ref[...] > t                       # (B, 1) bool
    out_ref[...] = jnp.where(mask, h_new, 0.0).astype(out_ref.dtype)


# ---------------------------------------------------------------------------
# Wrappers (layout changes, im2col, window extraction, param plumbing)
# ---------------------------------------------------------------------------

def matmul_scale_bias_relu(x, w, scale, bias):
    m0, k = x.shape
    n = w.shape[1]
    tm = _row_tile(m0)
    xp, _ = _pad_rows(x, tm)
    mp = xp.shape[0]
    out = pl.pallas_call(
        _matmul_scale_bias_relu_kernel,
        out_shape=jax.ShapeDtypeStruct((mp, n), jnp.float32),
        grid=(mp // tm,),
        in_specs=[pl.BlockSpec((tm, k), lambda i: (i, 0)),
                  pl.BlockSpec((k, n), lambda i: (0, 0)),
                  pl.BlockSpec((1, n), lambda i: (0, 0)),
                  pl.BlockSpec((1, n), lambda i: (0, 0))],
        out_specs=pl.BlockSpec((tm, n), lambda i: (i, 0)),
        compiler_params=_mosaic(("parallel",)),
    )(xp.astype(_MXU_DTYPE), w.astype(_MXU_DTYPE),
      scale.reshape(1, n).astype(jnp.float32), bias.reshape(1, n).astype(jnp.float32))
    return out[:m0]


def linear(x, w, b, *, relu):
    m0, k = x.shape
    n = w.shape[1]
    tm = _row_tile(m0)
    xp, _ = _pad_rows(x, tm)
    mp = xp.shape[0]
    kernel = functools.partial(_linear_kernel, relu=relu)
    out = pl.pallas_call(
        kernel,
        out_shape=jax.ShapeDtypeStruct((mp, n), jnp.float32),
        grid=(mp // tm,),
        in_specs=[pl.BlockSpec((tm, k), lambda i: (i, 0)),
                  pl.BlockSpec((k, n), lambda i: (0, 0)),
                  pl.BlockSpec((1, n), lambda i: (0, 0))],
        out_specs=pl.BlockSpec((tm, n), lambda i: (i, 0)),
        compiler_params=_mosaic(("parallel",)),
    )(xp.astype(_MXU_DTYPE), w.astype(_MXU_DTYPE), b.reshape(1, n).astype(jnp.float32))
    return out[:m0]


def conv_bn_relu(x_nhwc, w_hwio, conv_bias, gamma, beta, rmean, rvar, *, k, pad, eps=1e-5):
    """Conv2d(stride=1, padding=pad) + BatchNorm(eval) + ReLU via im2col + tiled Pallas matmul."""
    # TODO(synk): replace host-side im2col with an in-kernel tap reduction over the padded
    #             NHWC input to remove the k*k HBM duplication of the activations.
    b, h, w, cin = x_nhwc.shape
    cout = w_hwio.shape[-1]
    ho = h + 2 * pad - k + 1
    wo = w + 2 * pad - k + 1
    xp = jnp.pad(x_nhwc, ((0, 0), (pad, pad), (pad, pad), (0, 0)))
    cols = []
    for kh in range(k):
        for kw in range(k):
            cols.append(xp[:, kh:kh + ho, kw:kw + wo, :])
    patches = jnp.stack(cols, axis=3).reshape(b * ho * wo, k * k * cin)
    w_mat = w_hwio.reshape(k * k * cin, cout)
    scale = gamma / jnp.sqrt(rvar + eps)
    bias = beta + scale * (conv_bias - rmean)
    y = matmul_scale_bias_relu(patches, w_mat, scale, bias)
    return y.reshape(b, ho, wo, cout)


def max_pool(x_nhwc, *, k, s, pad):
    """MaxPool2d: window extraction in JAX, k*k reduction as an in-kernel grid axis."""
    b, h, w, c = x_nhwc.shape
    ho = (h + 2 * pad - k) // s + 1
    wo = (w + 2 * pad - k) // s + 1
    xp = jnp.pad(x_nhwc, ((0, 0), (pad, pad), (pad, pad), (0, 0)), constant_values=-jnp.inf)
    wins = []
    for kh in range(k):
        for kw in range(k):
            wins.append(xp[:, kh:kh + s * (ho - 1) + 1:s, kw:kw + s * (wo - 1) + 1:s, :])
    wins = jnp.stack(wins, axis=0).reshape(k * k, b * ho * wo, c)
    m0 = b * ho * wo
    tm = _row_tile(m0)
    mp = _round_up(m0, tm)
    if mp != m0:
        wins = jnp.pad(wins, ((0, 0), (0, mp - m0), (0, 0)))
    y = pl.pallas_call(
        _window_max_kernel,
        out_shape=jax.ShapeDtypeStruct((mp, c), jnp.float32),
        grid=(mp // tm, k * k),
        in_specs=[pl.BlockSpec((None, tm, c), lambda i, j: (j, i, 0))],
        out_specs=pl.BlockSpec((tm, c), lambda i, j: (i, 0)),
        compiler_params=_mosaic(("parallel", "arbitrary")),
    )(wins)
    return y[:m0].reshape(b, ho, wo, c)


def embedding_gather(ids_1d, table):
    """Embedding lookup as a scalar-prefetch row gather (no O(M*V) one-hot matmul)."""
    m = ids_1d.shape[0]
    v, e = table.shape
    table3 = table.reshape(v, 1, e)   # (V,1,E): trailing-two block dims equal full dims
    out = pl.pallas_call(
        _gather_kernel,
        out_shape=jax.ShapeDtypeStruct((m, 1, e), jnp.float32),
        grid_spec=pltpu.PrefetchScalarGridSpec(
            num_scalar_prefetch=1,
            grid=(m,),
            in_specs=[pl.BlockSpec((1, 1, e), lambda i, ids: (ids[i], 0, 0))],
            out_specs=pl.BlockSpec((1, 1, e), lambda i, ids: (i, 0, 0)),
        ),
        compiler_params=_mosaic(("arbitrary",)),
    )(ids_1d.astype(jnp.int32), table3.astype(jnp.float32))
    return out.reshape(m, e)


def lstm_forward(preact_tb4h, lengths, h0, c0, whh_t):
    """Single-layer unidirectional LSTM over precomputed input pre-activations.

    preact_tb4h: (T, B, 4H) = x @ W_ih^T + (b_ih + b_hh), time-major.
    Outputs are zero-masked at t >= length[b] (pad_packed_sequence semantics).
    """
    t, b, four_h = preact_tb4h.shape
    hsz = h0.shape[-1]
    lens = jnp.asarray(lengths, dtype=jnp.int32).reshape(b, 1)
    kernel = functools.partial(_lstm_step_kernel, hidden=hsz)
    out = pl.pallas_call(
        kernel,
        out_shape=jax.ShapeDtypeStruct((t, b, hsz), jnp.float32),
        grid=(t,),
        in_specs=[
            pl.BlockSpec((None, b, four_h), lambda i: (i, 0, 0)),
            pl.BlockSpec((b, 1), lambda i: (0, 0)),        # lengths, resident across steps
            pl.BlockSpec((b, hsz), lambda i: (0, 0)),
            pl.BlockSpec((b, hsz), lambda i: (0, 0)),
            pl.BlockSpec((hsz, four_h), lambda i: (0, 0)),
        ],
        out_specs=pl.BlockSpec((None, b, hsz), lambda i: (i, 0, 0)),
        scratch_shapes=[pltpu.VMEM((b, hsz), jnp.float32),
                        pltpu.VMEM((b, hsz), jnp.float32)],
        compiler_params=_mosaic(("arbitrary",)),
    )(preact_tb4h, lens, h0, c0, whh_t)
    return jnp.transpose(out, (1, 0, 2))   # (B, T, H)


def mlp_head(x, w1, b1, w2, b2):
    """Linear -> ReLU -> (Dropout=identity) -> Linear with row and vocab tiling."""
    m0, hsz = x.shape
    h2 = w1.shape[1]
    v = w2.shape[1]
    tm = _row_tile(m0)
    xp, _ = _pad_rows(x, tm)
    mp = xp.shape[0]
    tn = min(512, _round_up(v, 128))
    vp = _round_up(v, tn)
    w2p = jnp.pad(w2, ((0, 0), (0, vp - v))) if vp != v else w2
    b2p = jnp.pad(b2, ((0, vp - v),)) if vp != v else b2
    out = pl.pallas_call(
        _mlp_head_kernel,
        out_shape=jax.ShapeDtypeStruct((mp, vp), jnp.float32),
        grid=(mp // tm, vp // tn),
        in_specs=[
            pl.BlockSpec((tm, hsz), lambda i, j: (i, 0)),
            pl.BlockSpec((hsz, h2), lambda i, j: (0, 0)),
            pl.BlockSpec((1, h2), lambda i, j: (0, 0)),
            pl.BlockSpec((h2, tn), lambda i, j: (0, j)),
            pl.BlockSpec((1, tn), lambda i, j: (0, j)),
        ],
        out_specs=pl.BlockSpec((tm, tn), lambda i, j: (i, j)),
        scratch_shapes=[pltpu.VMEM((tm, h2), jnp.float32)],
        compiler_params=_mosaic(("parallel", "arbitrary")),
    )(xp.astype(_MXU_DTYPE), w1.astype(_MXU_DTYPE), b1.reshape(1, h2).astype(jnp.float32),
      w2p.astype(_MXU_DTYPE), b2p.reshape(1, vp).astype(jnp.float32))
    return out[:m0, :v]


# ---------------------------------------------------------------------------
# Model forward (Encoder -> Decoder)
# ---------------------------------------------------------------------------

def encoder_forward(images_nchw, p):
    x = jnp.transpose(images_nchw, (0, 2, 3, 1)).astype(jnp.float32)  # NCHW -> NHWC
    x = conv_bn_relu(x, p['conv1_w'], p['conv1_b'], p['bn1_g'], p['bn1_b'],
                     p['bn1_m'], p['bn1_v'], k=7, pad=1)
    x = max_pool(x, k=5, s=2, pad=1)
    x = conv_bn_relu(x, p['conv2_w'], p['conv2_b'], p['bn2_g'], p['bn2_b'],
                     p['bn2_m'], p['bn2_v'], k=5, pad=1)
    x = max_pool(x, k=5, s=3, pad=1)
    x = conv_bn_relu(x, p['conv3_w'], p['conv3_b'], p['bn3_g'], p['bn3_b'],
                     p['bn3_m'], p['bn3_v'], k=3, pad=1)
    x = max_pool(x, k=5, s=3, pad=1)
    # torch.flatten(x, start_dim=1) on NCHW: transpose back to channel-major order first
    b = x.shape[0]
    flat = jnp.transpose(x, (0, 3, 1, 2)).reshape(b, -1)
    h0 = linear(flat, p['h0_w'], p['h0_b'], relu=True)   # dropout = identity (eval)
    c0 = linear(flat, p['c0_w'], p['c0_b'], relu=True)
    return h0, c0


def decoder_forward(features, captions, lengths, p):
    h0, c0 = features
    b = captions.shape[0]
    hsz = h0.shape[-1]
    t_out = int(max(lengths))                            # pad_packed_sequence length
    # time-major id order so the pre-activations reshape directly to (T, B, 4H)
    cap_tm = jnp.transpose(captions[:, :t_out].astype(jnp.int32), (1, 0)).reshape(-1)
    emb = embedding_gather(cap_tm, p['embed'])           # (T*B, E)
    # fused-gate weights: W_ih^T:(E,4H), W_hh^T:(H,4H); gate order i,f,g,o preserved
    wih_t = p['w_ih'].T
    whh_t = p['w_hh'].T
    bias = p['b_ih'] + p['b_hh']
    # input projection hoisted out of the recurrence: one big parallel matmul
    preact = linear(emb, wih_t, bias, relu=False)        # (T*B, 4H)
    preact = preact.reshape(t_out, b, 4 * hsz)
    h = lstm_forward(preact, lengths, h0, c0, whh_t)     # (B, T, H)
    logits = mlp_head(h.reshape(b * t_out, hsz), p['fc1_w'], p['fc1_b'],
                      p['fc2_w'], p['fc2_b'])
    return logits.reshape(b, t_out, -1)


def image_captioning_forward(images, captions, lengths, params):
    features = encoder_forward(images, params)
    return decoder_forward(features, captions, lengths, params)


# ---------------------------------------------------------------------------
# Deterministic parameter init + example run
# ---------------------------------------------------------------------------

def _out_calc(i, k, p, s):
    return (i + 2 * p - k) // s + 1


def init_params(key, *, in_channels, fc_in, embed_size, hidden, vocab):
    ks = jax.random.split(key, 20)

    def w(k, shape, scale=0.1):
        return jax.random.normal(k, shape, jnp.float32) * scale

    half = hidden // 2
    p = {
        'conv1_w': w(ks[0], (7, 7, in_channels, 16)), 'conv1_b': w(ks[1], (16,), 0.01),
        'bn1_g': jnp.ones((16,), jnp.float32), 'bn1_b': jnp.zeros((16,), jnp.float32),
        'bn1_m': jnp.zeros((16,), jnp.float32), 'bn1_v': jnp.ones((16,), jnp.float32),
        'conv2_w': w(ks[2], (5, 5, 16, 32)), 'conv2_b': w(ks[3], (32,), 0.01),
        'bn2_g': jnp.ones((32,), jnp.float32), 'bn2_b': jnp.zeros((32,), jnp.float32),
        'bn2_m': jnp.zeros((32,), jnp.float32), 'bn2_v': jnp.ones((32,), jnp.float32),
        'conv3_w': w(ks[4], (3, 3, 32, 64)), 'conv3_b': w(ks[5], (64,), 0.01),
        'bn3_g': jnp.ones((64,), jnp.float32), 'bn3_b': jnp.zeros((64,), jnp.float32),
        'bn3_m': jnp.zeros((64,), jnp.float32), 'bn3_v': jnp.ones((64,), jnp.float32),
        'h0_w': w(ks[6], (fc_in, hidden)), 'h0_b': w(ks[7], (hidden,), 0.01),
        'c0_w': w(ks[8], (fc_in, hidden)), 'c0_b': w(ks[9], (hidden,), 0.01),
        'embed': w(ks[10], (vocab, embed_size), 0.5),
        'w_ih': w(ks[11], (4 * hidden, embed_size), 0.2),
        'w_hh': w(ks[12], (4 * hidden, hidden), 0.2),
        'b_ih': w(ks[13], (4 * hidden,), 0.01),
        'b_hh': w(ks[14], (4 * hidden,), 0.01),
        'fc1_w': w(ks[15], (hidden, half)), 'fc1_b': w(ks[16], (half,), 0.01),
        'fc2_w': w(ks[17], (half, vocab)), 'fc2_b': w(ks[18], (vocab,), 0.01),
    }
    return p


if __name__ == "__main__":
    # small config: Encoder(img_size=32, in_channels=3, lstm_hidden_size=32)
    #               Decoder(embed_size=16, lstm_hidden_size=32, vocab_size=50, num_layers=1)
    B, IMG, CIN = 2, 32, 3
    EMBED, HIDDEN, VOCAB, T = 16, 32, 50, 8
    lengths = [8, 5]

    # encoder spatial size chain (same formula as the PyTorch module)
    d = _out_calc(IMG, 7, 1, 1)
    d = _out_calc(d, 5, 1, 2)
    d = _out_calc(d, 5, 1, 1)
    d = _out_calc(d, 5, 1, 3)
    d = _out_calc(d, 3, 1, 1)
    d = _out_calc(d, 5, 1, 3)
    fc_in = 64 * d * d

    key = jax.random.PRNGKey(0)
    k_par, k_img, k_cap = jax.random.split(key, 3)
    params = init_params(k_par, in_channels=CIN, fc_in=fc_in,
                         embed_size=EMBED, hidden=HIDDEN, vocab=VOCAB)

    images = jax.random.normal(k_img, (B, CIN, IMG, IMG), jnp.float32)
    captions = jax.random.randint(k_cap, (B, T), 0, VOCAB, dtype=jnp.int32)

    out = image_captioning_forward(images, captions, lengths, params)
    out = jax.block_until_ready(out)
    assert out.shape == (B, max(lengths), VOCAB), out.shape
    assert bool(jnp.all(jnp.isfinite(out)))
    print("KERNEL_OK")
</pallas_src>

<mosaic_0001>
module attributes {stable_mosaic.version = 11 : i64} {
  func.func @_matmul_scale_bias_relu_kernel(%arg0: i32, %arg1: memref<512x147xf32, #tpu.memory_space<vmem>>, %arg2: memref<147x16xf32, #tpu.memory_space<vmem>>, %arg3: memref<1x16xf32, #tpu.memory_space<vmem>>, %arg4: memref<1x16xf32, #tpu.memory_space<vmem>>, %arg5: memref<512x16xf32, #tpu.memory_space<vmem>>) attributes {dimension_semantics = [#tpu.dimension_semantics<parallel>], iteration_bounds = array<i64: 4>, scalar_prefetch = 0 : i64, scratch_operands = 0 : i64, tpu.core_type = #tpu.core_type<tc>, window_params = [{transform_indices = @transform_0, window_bounds = array<i64: 512, 147>}, {pipeline_mode = #tpu.pipeline_mode<synchronous>, transform_indices = @transform_1, window_bounds = array<i64: 147, 16>}, {pipeline_mode = #tpu.pipeline_mode<synchronous>, transform_indices = @transform_2, window_bounds = array<i64: 1, 16>}, {pipeline_mode = #tpu.pipeline_mode<synchronous>, transform_indices = @transform_3, window_bounds = array<i64: 1, 16>}, {transform_indices = @transform_4, window_bounds = array<i64: 512, 16>}]} {
    %c0 = arith.constant 0 : index
    %c0_0 = arith.constant 0 : index
    %0 = vector.load %arg1[%c0, %c0_0] : memref<512x147xf32, #tpu.memory_space<vmem>>, vector<512x147xf32>
    %c0_1 = arith.constant 0 : index
    %c0_2 = arith.constant 0 : index
    %1 = vector.load %arg2[%c0_1, %c0_2] : memref<147x16xf32, #tpu.memory_space<vmem>>, vector<147x16xf32>
    %cst = arith.constant dense<0.000000e+00> : vector<512x16xf32>
    %2 = tpu.matmul %0, %1, %cst {dimension_numbers = #tpu.dot_dimension_numbers<[1], [0], [0], [1], [0, 0, 1, 1], [], []>} : vector<512x147xf32>, vector<147x16xf32>, vector<512x16xf32> -> vector<512x16xf32>
    %c0_3 = arith.constant 0 : index
    %c0_4 = arith.constant 0 : index
    %3 = vector.load %arg3[%c0_3, %c0_4] : memref<1x16xf32, #tpu.memory_space<vmem>>, vector<1x16xf32>
    %4 = vector.broadcast %3 : vector<1x16xf32> to vector<512x16xf32>
    %5 = arith.mulf %2, %4 : vector<512x16xf32>
    %c0_5 = arith.constant 0 : index
    %c0_6 = arith.constant 0 : index
    %6 = vector.load %arg4[%c0_5, %c0_6] : memref<1x16xf32, #tpu.memory_space<vmem>>, vector<1x16xf32>
    %7 = vector.broadcast %6 : vector<1x16xf32> to vector<512x16xf32>
    %8 = arith.addf %5, %7 : vector<512x16xf32>
    %cst_7 = arith.constant 0.000000e+00 : f32
    %9 = vector.broadcast %cst_7 : f32 to vector<512x16xf32>
    %10 = arith.maximumf %8, %9 : vector<512x16xf32>
    %c0_8 = arith.constant 0 : index
    %c0_9 = arith.constant 0 : index
    %11 = vector.load %arg5[%c0_8, %c0_9] : memref<512x16xf32, #tpu.memory_space<vmem>>, vector<512x16xf32>
    tpu.vector_store %arg5[%c0_8, %c0_9], %10 {strides = array<i32>} : memref<512x16xf32, #tpu.memory_space<vmem>>, vector<512x16xf32>,
    return
  }
  func.func @transform_0(%arg0: i32) -> (i32, i32) {
    %c0_i32 = arith.constant 0 : i32
    %c0_i32_0 = arith.constant 0 : i32
    return %arg0, %c0_i32 : i32, i32
  }
  func.func @transform_1(%arg0: i32) -> (i32, i32) {
    %c0_i32 = arith.constant 0 : i32
    %c0_i32_0 = arith.constant 0 : i32
    %c0_i32_1 = arith.constant 0 : i32
    return %c0_i32, %c0_i32_0 : i32, i32
  }
  func.func @transform_2(%arg0: i32) -> (i32, i32) {
    %c0_i32 = arith.constant 0 : i32
    %c0_i32_0 = arith.constant 0 : i32
    %c0_i32_1 = arith.constant 0 : i32
    return %c0_i32, %c0_i32_0 : i32, i32
  }
  func.func @transform_3(%arg0: i32) -> (i32, i32) {
    %c0_i32 = arith.constant 0 : i32
    %c0_i32_0 = arith.constant 0 : i32
    %c0_i32_1 = arith.constant 0 : i32
    return %c0_i32, %c0_i32_0 : i32, i32
  }
  func.func @transform_4(%arg0: i32) -> (i32, i32) {
    %c0_i32 = arith.constant 0 : i32
    %c0_i32_0 = arith.constant 0 : i32
    return %arg0, %c0_i32 : i32, i32
  }
}

</mosaic_0001>

<llo_original>
// kernel: tpu_custom_call.1
$region0: #{tpu_custom_call.1}
  #allocation0 [shape = 'u32[]', space=smem, size = 0x4, offset = 0x4, fixed_abs, tag = 'smem constant byte address 0x4 - core index']
  #allocation1 [shape = 'u32[144,128]{1,0:T(1,128)}', space=vmem, size = 0x12000, scoped, tag = 'internal scratch']
  %s0 = inlined_call_operand.vmem [shape: f32[2048,147], index: 0, kind: input, shape index: {}]
  %s1 = inlined_call_operand.vmem [shape: f32[147,16], index: 1, kind: input, shape index: {}]
  %s2 = inlined_call_operand.vmem [shape: f32[1,16], index: 2, kind: input, shape index: {}]
  %s3 = inlined_call_operand.vmem [shape: f32[1,16], index: 3, kind: input, shape index: {}]
  %s4 = inlined_call_operand.vmem [shape: f32[2048,16], index: 4, kind: output, shape index: {}]
  %s5 = sld [smem:[#allocation0]]
  $region49: #{tpu_custom_call.1} parent=0
    _
  %s7 = ssub.s32 1, %s5
  %s8 = scalar_select 0, %s7, %s5
  loop: start=0, step=1, limit=6
  $region2: #{tpu_custom_call.1} parent=0 // loop_pre_header
    _
  $region3: #{tpu_custom_call.1} parent=0 // loop_header
    %s10 = sphi 0, %s14
    %p11 = scmp.ge.s32.totalorder %s10, 6
    %s20 = sphi 0, %s22
    %s23 = sphi 0, %s20
    %s24 = sphi 0, %s23
    %s40 = sphi 0, %s24
    %s44 = sphi 0, %s44
    %s46 = sphi 0, %s44
    %s47 = sphi 0, %s46
    %s61 = sphi 0, %s47
    %s65 = sphi 0, %s65
    %s67 = sphi 0, %s65
    %s68 = sphi 0, %s67
    %s82 = sphi 0, %s68
    %s86 = sphi 0, %s86
    %s88 = sphi 0, %s86
    %s89 = sphi 0, %s88
    %s103 = sphi 0, %s89
    %s109 = sphi 0, %s111
    %s112 = sphi 0, %s109
    %s113 = sphi 0, %s112
    %s129 = sphi 0, %s113
  $region4: #{tpu_custom_call.1} parent=0 // loop_header_branch
    %13 = sbr.rel (%p11) target = $region8
  $region5: #{tpu_custom_call.1} parent=0 // loop_body
    %s15 = ssub.s32 %s10, 1
    %s16 = ssub.s32 %s10, 2
    %s17 = sadd.s32 %s10, 1
    %s18 = ssub.s32 %s10, %s17
    %p19 = scmp.eq.s32.totalorder %s18, 0
    %s21 = sadd.s32 %s20, 1
    %s22 = scalar_select %p19, %s20, %s21
    %p25 = pneg %p19
    %p26 = scmp.eq.s32.totalorder %s10, 3
    %p27 = por %p25, %p26
    %p28 = scmp.ne.s32.totalorder %s20, %s23
    %p29 = scmp.eq.s32.totalorder %s10, 0
    %p30 = por %p28, %p29
    %p31 = scmp.ne.s32.totalorder %s20, %s23
    %p32 = scmp.eq.s32.totalorder %s15, 3
    %p33 = por %p31, %p32
    %p34 = scmp.ne.s32.totalorder %s23, %s24
    %p35 = scmp.eq.s32.totalorder %s15, 0
    %p36 = por %p34, %p35
    %p37 = scmp.ne.s32.totalorder %s23, %s24
    %p38 = scmp.eq.s32.totalorder %s16, 3
    %p39 = por %p37, %p38
    %p41 = scmp.ne.s32.totalorder %s24, %s40
    %p42 = scmp.eq.s32.totalorder %s16, 0
    %p43 = por %p41, %p42
    %s45 = sadd.s32 %s44, 1
    %p48 = scmp.eq.s32.totalorder %s10, 3
    %p49 = scmp.ne.s32.totalorder %s44, %s46
    %p50 = scmp.eq.s32.totalorder %s10, 0
    %p51 = por %p49, %p50
    %p52 = scmp.ne.s32.totalorder %s44, %s46
    %p53 = scmp.eq.s32.totalorder %s15, 3
    %p54 = por %p52, %p53
    %p55 = scmp.ne.s32.totalorder %s46, %s47
    %p56 = scmp.eq.s32.totalorder %s15, 0
    %p57 = por %p55, %p56
    %p58 = scmp.ne.s32.totalorder %s46, %s47
    %p59 = scmp.eq.s32.totalorder %s16, 3
    %p60 = por %p58, %p59
    %p62 = scmp.ne.s32.totalorder %s47, %s61
    %p63 = scmp.eq.s32.totalorder %s16, 0
    %p64 = por %p62, %p63
    %s66 = sadd.s32 %s65, 1
    %p69 = scmp.eq.s32.totalorder %s10, 3
    %p70 = scmp.ne.s32.totalorder %s65, %s67
    %p71 = scmp.eq.s32.totalorder %s10, 0
    %p72 = por %p70, %p71
    %p73 = scmp.ne.s32.totalorder %s65, %s67
    %p74 = scmp.eq.s32.totalorder %s15, 3
    %p75 = por %p73, %p74
    %p76 = scmp.ne.s32.totalorder %s67, %s68
    %p77 = scmp.eq.s32.totalorder %s15, 0
    %p78 = por %p76, %p77
    %p79 = scmp.ne.s32.totalorder %s67, %s68
    %p80 = scmp.eq.s32.totalorder %s16, 3
    %p81 = por %p79, %p80
    %p83 = scmp.ne.s32.totalorder %s68, %s82
    %p84 = scmp.eq.s32.totalorder %s16, 0
    %p85 = por %p83, %p84
    %s87 = sadd.s32 %s86, 1
    %p90 = scmp.eq.s32.totalorder %s10, 3
    %p91 = scmp.ne.s32.totalorder %s86, %s88
    %p92 = scmp.eq.s32.totalorder %s10, 0
    %p93 = por %p91, %p92
    %p94 = scmp.ne.s32.totalorder %s86, %s88
    %p95 = scmp.eq.s32.totalorder %s15, 3
    %p96 = por %p94, %p95
    %p97 = scmp.ne.s32.totalorder %s88, %s89
    %p98 = scmp.eq.s32.totalorder %s15, 0
    %p99 = por %p97, %p98
    %p100 = scmp.ne.s32.totalorder %s88, %s89
    %p101 = scmp.eq.s32.totalorder %s16, 3
    %p102 = por %p100, %p101
    %p104 = scmp.ne.s32.totalorder %s89, %s103
    %p105 = scmp.eq.s32.totalorder %s16, 0
    %p106 = por %p104, %p105
    %s107 = ssub.s32 %s10, %s17
    %p108 = scmp.eq.s32.totalorder %s107, 0
    %s110 = sadd.s32 %s109, 1
    %s111 = scalar_select %p108, %s109, %s110
    %p114 = pneg %p108
    %p115 = scmp.eq.s32.totalorder %s10, 3
    %p116 = por %p114, %p115
    %p117 = scmp.ne.s32.totalorder %s109, %s112
    %p118 = scmp.eq.s32.totalorder %s10, 0
    %p119 = por %p117, %p118
    %p120 = scmp.ne.s32.totalorder %s109, %s112
    %p121 = scmp.eq.s32.totalorder %s15, 3
    %p122 = por %p120, %p121
    %p123 = scmp.ne.s32.totalorder %s112, %s113
    %p124 = scmp.eq.s32.totalorder %s15, 0
    %p125 = por %p123, %p124
    %p126 = scmp.ne.s32.totalorder %s112, %s113
    %p127 = scmp.eq.s32.totalorder %s16, 3
    %p128 = por %p126, %p127
    %p130 = scmp.ne.s32.totalorder %s113, %s129
    %p131 = scmp.eq.s32.totalorder %s16, 0
    %p132 = por %p130, %p131
    %p133 = scmp.le.s32.totalorder 1, %s10
    %p134 = scmp.lt.s32.totalorder %s10, 5
    %p135 = pnand %p133, %p134
    %p136 = pneg %p135
    // Predicated region
    $region9: #{tpu_custom_call.1} parent=5 // pred_check
      _
    $region10: #{tpu_custom_call.1} parent=5 // pred_check_branch
      %138 = sbr.rel (%p135) target = $region12
    $region11: #{tpu_custom_call.1} parent=5 // pred_region
      %s139 = ssub.s32 %s10, 1
      // Predicated region
      $region13: #{tpu_custom_call.1} parent=11 // pred_check
        %p140 = pneg %p57
      $region14: #{tpu_custom_call.1} parent=11 // pred_check_branch
        %142 = sbr.rel (%p140) target = $region16
      $region15: #{tpu_custom_call.1} parent=11 // pred_region
        _
      $region16: #{tpu_custom_call.1} parent=11 // pred_fallthru
        _
      // Predicated region
      $region17: #{tpu_custom_call.1} parent=11 // pred_check
        %p143 = pneg %p78
      $region18: #{tpu_custom_call.1} parent=11 // pred_check_branch
        %145 = sbr.rel (%p143) target = $region20
      $region19: #{tpu_custom_call.1} parent=11 // pred_region
        _
      $region20: #{tpu_custom_call.1} parent=11 // pred_fallthru
        _
      // Predicated region
      $region21: #{tpu_custom_call.1} parent=11 // pred_check
        %p146 = pneg %p99
      $region22: #{tpu_custom_call.1} parent=11 // pred_check_branch
        %148 = sbr.rel (%p146) target = $region24
      $region23: #{tpu_custom_call.1} parent=11 // pred_region
        _
      $region24: #{tpu_custom_call.1} parent=11 // pred_fallthru
        _
    $region12: #{tpu_custom_call.1} parent=5 // pred_fallthru
      _
    %p149 = scmp.lt.s32.totalorder %s10, 4
    // Predicated region
    $region25: #{tpu_custom_call.1} parent=5 // pred_check
      %p150 = pneg %p149
    $region26: #{tpu_custom_call.1} parent=5 // pred_check_branch
      %152 = sbr.rel (%p150) target = $region28
    $region27: #{tpu_custom_call.1} parent=5 // pred_region
      // Predicated region
      $region29: #{tpu_custom_call.1} parent=27 // pred_check
        %p153 = pneg %p30
      $region30: #{tpu_custom_call.1} parent=27 // pred_check_branch
        %155 = sbr.rel (%p153) target = $region32
      $region31: #{tpu_custom_call.1} parent=27 // pred_region
        %s156 = smul.u32 64, %s10
        %p157 = scmp.lt.s32.totalorder %s156, 255
        %s158 = scalar_select %p157, %s156, 255
        %s159 = smul.addr %s158, 2
        %s160 = smul.addr %s159, 8
        %s161 = scalar_lea.vmem %s0, %s160
        %s162 = smul.u32 64, %s10
      $region32: #{tpu_custom_call.1} parent=27 // pred_fallthru
        _
    $region28: #{tpu_custom_call.1} parent=5 // pred_fallthru
      _
    %p163 = scmp.le.s32.totalorder 1, %s10
    %p164 = scmp.lt.s32.totalorder %s10, 5
    %p165 = pnand %p163, %p164
    %p166 = pneg %p165
    // Predicated region
    $region33: #{tpu_custom_call.1} parent=5 // pred_check
      _
    $region34: #{tpu_custom_call.1} parent=5 // pred_check_branch
      %168 = sbr.rel (%p165) target = $region36
    $region35: #{tpu_custom_call.1} parent=5 // pred_region
      %s169 = ssub.s32 %s10, 1
      %s170 = smul.u32 64, %s15
      %p171 = scmp.lt.s32.totalorder %s170, 255
      %s172 = scalar_select %p171, %s170, 255
      %s173 = smul.addr %s172, 2
      %s174 = smul.addr %s173, 8
      %s175 = scalar_lea.vmem %s0, %s174
      %p176 = pneg %p36
      %p177 = pneg %p33
      %p178 = pneg %p57
      %p179 = pneg %p54
      %p180 = pneg %p78
      %p181 = pneg %p75
      %p182 = pneg %p99
      %p183 = pneg %p96
      %p184 = pneg %p125
      %p185 = pneg %p122
      %s186 = smul.u32 64, %s15
      %p187 = scmp.lt.s32.totalorder %s186, 255
      %s188 = scalar_select %p187, %s186, 255
      %s189 = smul.addr %s188, 8
      %s190 = scalar_lea.vmem %s4, %s189
      %s191 = smul.u32 64, %s15
      %p192 = scmp.lt.s32.totalorder %s191, 255
      %s193 = scalar_select %p192, %s191, 255
      %s194 = smul.addr %s193, 2
      %s195 = smul.addr %s194, 8
      %s196 = scalar_lea.vmem %s0, %s195
      %s197 = smul.u32 64, %s15
      %s198 = smul.u32 64, %s15
      %p199 = scmp.lt.s32.totalorder %s198, 255
      %s200 = scalar_select %p199, %s198, 255
      %s201 = smul.addr %s200, 8
      %s202 = scalar_lea.vmem %s4, %s201
      %s203 = smul.u32 64, %s15
      %v204 = vld [vmem:[%s196] sm:$0xff]
      %v205 = vld [vmem:[%s196 + $0x8] sm:$0xff]
      %v206 = vld [vmem:[%s196 + $0x10] sm:$0xff]
      %v207 = vld [vmem:[%s196 + $0x18] sm:$0xff]
      %v208 = vld [vmem:[%s196 + $0x20] sm:$0xff]
      %v209 = vld [vmem:[%s196 + $0x28] sm:$0xff]
      %v210 = vld [vmem:[%s196 + $0x30] sm:$0xff]
      %v211 = vld [vmem:[%s196 + $0x38] sm:$0xff]
      %v212 = vld [vmem:[%s196 + $0x40] sm:$0xff]
      %v213 = vld [vmem:[%s196 + $0x48] sm:$0xff]
      %v214 = vld [vmem:[%s196 + $0x50] sm:$0xff]
      %v215 = vld [vmem:[%s196 + $0x58] sm:$0xff]
      %v216 = vld [vmem:[%s196 + $0x60] sm:$0xff]
      %v217 = vld [vmem:[%s196 + $0x68] sm:$0xff]
      %v218 = vld [vmem:[%s196 + $0x70] sm:$0xff]
      %v219 = vld [vmem:[%s196 + $0x78] sm:$0xff]
      %v220 = vld [vmem:[%s196 + $0x80] sm:$0xff]
      %v221 = vld [vmem:[%s196 + $0x88] sm:$0xff]
      %v222 = vld [vmem:[%s196 + $0x90] sm:$0xff]
      %v223 = vld [vmem:[%s196 + $0x98] sm:$0xff]
      %v224 = vld [vmem:[%s196 + $0xa0] sm:$0xff]
      %v225 = vld [vmem:[%s196 + $0xa8] sm:$0xff]
      %v226 = vld [vmem:[%s196 + $0xb0] sm:$0xff]
      %v227 = vld [vmem:[%s196 + $0xb8] sm:$0xff]
      %v228 = vld [vmem:[%s196 + $0xc0] sm:$0xff]
      %v229 = vld [vmem:[%s196 + $0xc8] sm:$0xff]
      %v230 = vld [vmem:[%s196 + $0xd0] sm:$0xff]
      %v231 = vld [vmem:[%s196 + $0xd8] sm:$0xff]
      %v232 = vld [vmem:[%s196 + $0xe0] sm:$0xff]
      %v233 = vld [vmem:[%s196 + $0xe8] sm:$0xff]
      %v234 = vld [vmem:[%s196 + $0xf0] sm:$0xff]
      %v235 = vld [vmem:[%s196 + $0xf8] sm:$0xff]
      %v236 = vld [vmem:[%s196 + $0x100] sm:$0xff]
      %v237 = vld [vmem:[%s196 + $0x108] sm:$0xff]
      %v238 = vld [vmem:[%s196 + $0x110] sm:$0xff]
      %v239 = vld [vmem:[%s196 + $0x118] sm:$0xff]
      %v240 = vld [vmem:[%s196 + $0x120] sm:$0xff]
      %v241 = vld [vmem:[%s196 + $0x128] sm:$0xff]
      %v242 = vld [vmem:[%s196 + $0x130] sm:$0xff]
      %v243 = vld [vmem:[%s196 + $0x138] sm:$0xff]
      %v244 = vld [vmem:[%s196 + $0x140] sm:$0xff]
      %v245 = vld [vmem:[%s196 + $0x148] sm:$0xff]
      %v246 = vld [vmem:[%s196 + $0x150] sm:$0xff]
      %v247 = vld [vmem:[%s196 + $0x158] sm:$0xff]
      %v248 = vld [vmem:[%s196 + $0x160] sm:$0xff]
      %v249 = vld [vmem:[%s196 + $0x168] sm:$0xff]
      %v250 = vld [vmem:[%s196 + $0x170] sm:$0xff]
      %v251 = vld [vmem:[%s196 + $0x178] sm:$0xff]
      %v252 = vld [vmem:[%s196 + $0x180] sm:$0xff]
      %v253 = vld [vmem:[%s196 + $0x188] sm:$0xff]
      %v254 = vld [vmem:[%s196 + $0x190] sm:$0xff]
      %v255 = vld [vmem:[%s196 + $0x198] sm:$0xff]
      %v256 = vld [vmem:[%s196 + $0x1a0] sm:$0xff]
      %v257 = vld [vmem:[%s196 + $0x1a8] sm:$0xff]
      %v258 = vld [vmem:[%s196 + $0x1b0] sm:$0xff]
      %v259 = vld [vmem:[%s196 + $0x1b8] sm:$0xff]
      %v260 = vld [vmem:[%s196 + $0x1c0] sm:$0xff]
      %v261 = vld [vmem:[%s196 + $0x1c8] sm:$0xff]
      %v262 = vld [vmem:[%s196 + $0x1d0] sm:$0xff]
      %v263 = vld [vmem:[%s196 + $0x1d8] sm:$0xff]
      %v264 = vld [vmem:[%s196 + $0x1e0] sm:$0xff]
      %v265 = vld [vmem:[%s196 + $0x1e8] sm:$0xff]
      %v266 = vld [vmem:[%s196 + $0x1f0] sm:$0xff]
      %v267 = vld [vmem:[%s196 + $0x1f8] sm:$0xff]
      %v268 = vld [vmem:[%s196 + $0x200] sm:$0xff]
      %v269 = vld [vmem:[%s196 + $0x208] sm:$0xff]
      %v270 = vld [vmem:[%s196 + $0x210] sm:$0xff]
      %v271 = vld [vmem:[%s196 + $0x218] sm:$0xff]
      %v272 = vld [vmem:[%s196 + $0x220] sm:$0xff]
      %v273 = vld [vmem:[%s196 + $0x228] sm:$0xff]
      %v274 = vld [vmem:[%s196 + $0x230] sm:$0xff]
      %v275 = vld [vmem:[%s196 + $0x238] sm:$0xff]
      %v276 = vld [vmem:[%s196 + $0x240] sm:$0xff]
      %v277 = vld [vmem:[%s196 + $0x248] sm:$0xff]
      %v278 = vld [vmem:[%s196 + $0x250] sm:$0xff]
      %v279 = vld [vmem:[%s196 + $0x258] sm:$0xff]
      %v280 = vld [vmem:[%s196 + $0x260] sm:$0xff]
      %v281 = vld [vmem:[%s196 + $0x268] sm:$0xff]
      %v282 = vld [vmem:[%s196 + $0x270] sm:$0xff]
      %v283 = vld [vmem:[%s196 + $0x278] sm:$0xff]
      %v284 = vld [vmem:[%s196 + $0x280] sm:$0xff]
      %v285 = vld [vmem:[%s196 + $0x288] sm:$0xff]
      %v286 = vld [vmem:[%s196 + $0x290] sm:$0xff]
      %v287 = vld [vmem:[%s196 + $0x298] sm:$0xff]
      %v288 = vld [vmem:[%s196 + $0x2a0] sm:$0xff]
      %v289 = vld [vmem:[%s196 + $0x2a8] sm:$0xff]
      %v290 = vld [vmem:[%s196 + $0x2b0] sm:$0xff]
      %v291 = vld [vmem:[%s196 + $0x2b8] sm:$0xff]
      %v292 = vld [vmem:[%s196 + $0x2c0] sm:$0xff]
      %v293 = vld [vmem:[%s196 + $0x2c8] sm:$0xff]
      %v294 = vld [vmem:[%s196 + $0x2d0] sm:$0xff]
      %v295 = vld [vmem:[%s196 + $0x2d8] sm:$0xff]
      %v296 = vld [vmem:[%s196 + $0x2e0] sm:$0xff]
      %v297 = vld [vmem:[%s196 + $0x2e8] sm:$0xff]
      %v298 = vld [vmem:[%s196 + $0x2f0] sm:$0xff]
      %v299 = vld [vmem:[%s196 + $0x2f8] sm:$0xff]
      %v300 = vld [vmem:[%s196 + $0x300] sm:$0xff]
      %v301 = vld [vmem:[%s196 + $0x308] sm:$0xff]
      %v302 = vld [vmem:[%s196 + $0x310] sm:$0xff]
      %v303 = vld [vmem:[%s196 + $0x318] sm:$0xff]
      %v304 = vld [vmem:[%s196 + $0x320] sm:$0xff]
      %v305 = vld [vmem:[%s196 + $0x328] sm:$0xff]
      %v306 = vld [vmem:[%s196 + $0x330] sm:$0xff]
      %v307 = vld [vmem:[%s196 + $0x338] sm:$0xff]
      %v308 = vld [vmem:[%s196 + $0x340] sm:$0xff]
      %v309 = vld [vmem:[%s196 + $0x348] sm:$0xff]
      %v310 = vld [vmem:[%s196 + $0x350] sm:$0xff]
      %v311 = vld [vmem:[%s196 + $0x358] sm:$0xff]
      %v312 = vld [vmem:[%s196 + $0x360] sm:$0xff]
      %v313 = vld [vmem:[%s196 + $0x368] sm:$0xff]
      %v314 = vld [vmem:[%s196 + $0x370] sm:$0xff]
      %v315 = vld [vmem:[%s196 + $0x378] sm:$0xff]
      %v316 = vld [vmem:[%s196 + $0x380] sm:$0xff]
      %v317 = vld [vmem:[%s196 + $0x388] sm:$0xff]
      %v318 = vld [vmem:[%s196 + $0x390] sm:$0xff]
      %v319 = vld [vmem:[%s196 + $0x398] sm:$0xff]
      %v320 = vld [vmem:[%s196 + $0x3a0] sm:$0xff]
      %v321 = vld [vmem:[%s196 + $0x3a8] sm:$0xff]
      %v322 = vld [vmem:[%s196 + $0x3b0] sm:$0xff]
      %v323 = vld [vmem:[%s196 + $0x3b8] sm:$0xff]
      %v324 = vld [vmem:[%s196 + $0x3c0] sm:$0xff]
      %v325 = vld [vmem:[%s196 + $0x3c8] sm:$0xff]
      %v326 = vld [vmem:[%s196 + $0x3d0] sm:$0xff]
      %v327 = vld [vmem:[%s196 + $0x3d8] sm:$0xff]
      %v328 = vld [vmem:[%s196 + $0x3e0] sm:$0xff]
      %v329 = vld [vmem:[%s196 + $0x3e8] sm:$0xff]
      %v330 = vld [vmem:[%s196 + $0x3f0] sm:$0xff]
      %v331 = vld [vmem:[%s196 + $0x3f8] sm:$0xff]
      %v332 = vld [vmem:[%s1] sm:$0xff]
      %v333 = vld [vmem:[%s1 + $0x8] sm:$0xff]
      %v334 = vld [vmem:[%s1 + $0x10] sm:$0xff]
      %v335 = vld [vmem:[%s1 + $0x18] sm:$0xff]
      %v336 = vld [vmem:[%s1 + $0x20] sm:$0xff]
      %v337 = vld [vmem:[%s1 + $0x28] sm:$0xff]
      %v338 = vld [vmem:[%s1 + $0x30] sm:$0xff]
      %v339 = vld [vmem:[%s1 + $0x38] sm:$0xff]
      %v340 = vld [vmem:[%s1 + $0x40] sm:$0xff]
      %v341 = vld [vmem:[%s1 + $0x48] sm:$0xff]
      %v342 = vld [vmem:[%s1 + $0x50] sm:$0xff]
      %v343 = vld [vmem:[%s1 + $0x58] sm:$0xff]
      %v344 = vld [vmem:[%s1 + $0x60] sm:$0xff]
      %v345 = vld [vmem:[%s1 + $0x68] sm:$0xff]
      %v346 = vld [vmem:[%s1 + $0x70] sm:$0xff]
      %v347 = vld [vmem:[%s1 + $0x78] sm:$0xff]
      %v348 = vld [vmem:[%s1 + $0x80] sm:$0xff]
      %v349 = vld [vmem:[%s1 + $0x88] sm:$0xff]
      %v350 = vld [vmem:[%s1 + $0x90] sm:$0x7]
      %vm351 = vcmask 154624
      %v353 = vsel %vm351, %v205, 0
      %v356 = vsel %vm351, %v207, 0
      %v359 = vsel %vm351, %v209, 0
      %v362 = vsel %vm351, %v211, 0
      %v365 = vsel %vm351, %v213, 0
      %v368 = vsel %vm351, %v215, 0
      %v371 = vsel %vm351, %v217, 0
      %v374 = vsel %vm351, %v219, 0
      %v377 = vsel %vm351, %v221, 0
      %v380 = vsel %vm351, %v223, 0
      %v383 = vsel %vm351, %v225, 0
      %v386 = vsel %vm351, %v227, 0
      %v389 = vsel %vm351, %v229, 0
      %v392 = vsel %vm351, %v231, 0
      %v395 = vsel %vm351, %v233, 0
      %v398 = vsel %vm351, %v235, 0
      %v401 = vsel %vm351, %v237, 0
      %v404 = vsel %vm351, %v239, 0
      %v407 = vsel %vm351, %v241, 0
      %v410 = vsel %vm351, %v243, 0
      %v413 = vsel %vm351, %v245, 0
      %v416 = vsel %vm351, %v247, 0
      %v419 = vsel %vm351, %v249, 0
      %v422 = vsel %vm351, %v251, 0
      %v425 = vsel %vm351, %v253, 0
      %v428 = vsel %vm351, %v255, 0
      %v431 = vsel %vm351, %v257, 0
      %v434 = vsel %vm351, %v259, 0
      %v437 = vsel %vm351, %v261, 0
      %v440 = vsel %vm351, %v263, 0
      %v443 = vsel %vm351, %v265, 0
      %v446 = vsel %vm351, %v267, 0
      %v449 = vsel %vm351, %v269, 0
      %v452 = vsel %vm351, %v271, 0
      %v455 = vsel %vm351, %v273, 0
      %v458 = vsel %vm351, %v275, 0
      %v461 = vsel %vm351, %v277, 0
      %v464 = vsel %vm351, %v279, 0
      %v467 = vsel %vm351, %v281, 0
      %v470 = vsel %vm351, %v283, 0
      %v473 = vsel %vm351, %v285, 0
      %v476 = vsel %vm351, %v287, 0
      %v479 = vsel %vm351, %v289, 0
      %v482 = vsel %vm351, %v291, 0
      %v485 = vsel %vm351, %v293, 0
      %v488 = vsel %vm351, %v295, 0
      %v491 = vsel %vm351, %v297, 0
      %v494 = vsel %vm351, %v299, 0
      %v497 = vsel %vm351, %v301, 0
      %v500 = vsel %vm351, %v303, 0
      %v503 = vsel %vm351, %v305, 0
      %v506 = vsel %vm351, %v307, 0
      %v509 = vsel %vm351, %v309, 0
      %v512 = vsel %vm351, %v311, 0
      %v515 = vsel %vm351, %v313, 0
      %v518 = vsel %vm351, %v315, 0
      %v521 = vsel %vm351, %v317, 0
      %v524 = vsel %vm351, %v319, 0
      %v527 = vsel %vm351, %v321, 0
      %v530 = vsel %vm351, %v323, 0
      %v533 = vsel %vm351, %v325, 0
      %v536 = vsel %vm351, %v327, 0
      %v539 = vsel %vm351, %v329, 0
      %v542 = vsel %vm351, %v331, 0
      %vm544 = vcmask 1042432
      %v546 = vsel %vm544, %v350, 0
      %548 = vmatprep.subr.mxu0 0.0
      %549 = vmatpush1.msra.mxu0 %v347
      %550 = vmatprep.subr.mxu0 0.0
      %551 = vmatpush1.msra.mxu0 %v346
      %552 = vmatprep.subr.mxu0 0.0
      %553 = vmatpush1.msra.mxu0 %v345
      %554 = vmatprep.subr.mxu0 0.0
      %555 = vmatpush1.msra.mxu0 %v344
      %556 = vmatprep.subr.mxu0 0.0
      %557 = vmatpush1.msra.mxu0 %v343
      %558 = vmatprep.subr.mxu0 0.0
      %559 = vmatpush1.msra.mxu0 %v342
      %560 = vmatprep.subr.mxu0 0.0
      %561 = vmatpush1.msra.mxu0 %v341
      %562 = vmatprep.subr.mxu0 0.0
      %563 = vmatpush1.msra.mxu0 %v340
      %564 = vmatprep.subr.mxu0 0.0
      %565 = vmatpush1.msra.mxu0 %v339
      %566 = vmatprep.subr.mxu0 0.0
      %567 = vmatpush1.msra.mxu0 %v338
      %568 = vmatprep.subr.mxu0 0.0
      %569 = vmatpush1.msra.mxu0 %v337
      %570 = vmatprep.subr.mxu0 0.0
      %571 = vmatpush1.msra.mxu0 %v336
      %572 = vmatprep.subr.mxu0 0.0
      %573 = vmatpush1.msra.mxu0 %v335
      %574 = vmatprep.subr.mxu0 0.0
      %575 = vmatpush1.msra.mxu0 %v334
      %576 = vmatprep.subr.mxu0 0.0
      %577 = vmatpush1.msra.mxu0 %v333
      %578 = vmatprep.subr.mxu0 0.0
      %579 = vmatpush1.msra.mxu0 %v332
      %580 = vmatprep.subr.mxu0 0.0
      %581 = vmatpush2.msra.mxu0 0.0
      %582 = vmatprep.subr.mxu0 0.0
      %583 = vmatpush2.msra.mxu0 0.0
      %584 = vmatprep.subr.mxu0 0.0
      %585 = vmatpush2.msra.mxu0 0.0
      %586 = vmatprep.subr.mxu0 0.0
      %587 = vmatpush2.msra.mxu0 0.0
      %588 = vmatprep.subr.mxu0 0.0
      %589 = vmatpush2.msra.mxu0 0.0
      %590 = vmatprep.subr.mxu0 0.0
      %591 = vmatpush2.msra.mxu0 0.0
      %592 = vmatprep.subr.mxu0 0.0
      %593 = vmatpush2.msra.mxu0 0.0
      %594 = vmatprep.subr.mxu0 0.0
      %595 = vmatpush2.msra.mxu0 0.0
      %596 = vmatprep.subr.mxu0 0.0
      %597 = vmatpush2.msra.mxu0 0.0
      %598 = vmatprep.subr.mxu0 0.0
      %599 = vmatpush2.msra.mxu0 0.0
      %600 = vmatprep.subr.mxu0 0.0
      %601 = vmatpush2.msra.mxu0 0.0
      %602 = vmatprep.subr.mxu0 0.0
      %603 = vmatpush2.msra.mxu0 0.0
      %604 = vmatprep.subr.mxu0 0.0
      %605 = vmatpush2.msra.mxu0 0.0
      %606 = vmatprep.subr.mxu0 0.0
      %607 = vmatpush2.msra.mxu0 %v546
      %608 = vmatprep.subr.mxu0 0.0
      %609 = vmatpush2.msra.mxu0 %v349
      %610 = vmatprep.subr.mxu0 0.0
      %611 = vmatpush2.msra.mxu0 %v348
      %612 = vmatprep.mubr.f32.mxu0 %v353
      %613 = vmatmul.mubr.f32.gmra.mxu0 %v204
      %v614 = vpop.f32.mrf.mxu0
      %v615 = vadd.f32 0.0, %v614
      %v616 = vpop.f32.mrf.mxu0
      %617 = vmatprep.mubr.f32.mxu0 %v356
      %618 = vmatmul.mubr.f32.gmra.mxu0 %v206
      %v619 = vpop.f32.mrf.mxu0
      %v620 = vadd.f32 0.0, %v619
      %v621 = vpop.f32.mrf.mxu0
      %622 = vmatprep.mubr.f32.mxu0 %v359
      %623 = vmatmul.mubr.f32.gmra.mxu0 %v208
      %v624 = vpop.f32.mrf.mxu0
      %v625 = vadd.f32 0.0, %v624
      %v626 = vpop.f32.mrf.mxu0
      %627 = vmatprep.mubr.f32.mxu0 %v362
      %628 = vmatmul.mubr.f32.gmra.mxu0 %v210
      %v629 = vpop.f32.mrf.mxu0
      %v630 = vadd.f32 0.0, %v629
      %v631 = vpop.f32.mrf.mxu0
      %632 = vmatprep.mubr.f32.mxu0 %v365
      %633 = vmatmul.mubr.f32.gmra.mxu0 %v212
      %v634 = vpop.f32.mrf.mxu0
      %v635 = vadd.f32 0.0, %v634
      %v636 = vpop.f32.mrf.mxu0
      %637 = vmatprep.mubr.f32.mxu0 %v368
      %638 = vmatmul.mubr.f32.gmra.mxu0 %v214
      %v639 = vpop.f32.mrf.mxu0
      %v640 = vadd.f32 0.0, %v639
      %v641 = vpop.f32.mrf.mxu0
      %642 = vmatprep.mubr.f32.mxu0 %v371
      %643 = vmatmul.mubr.f32.gmra.mxu0 %v216
      %v644 = vpop.f32.mrf.mxu0
      %v645 = vadd.f32 0.0, %v644
      %v646 = vpop.f32.mrf.mxu0
      %647 = vmatprep.mubr.f32.mxu0 %v374
      %648 = vmatmul.mubr.f32.gmra.mxu0 %v218
      %v649 = vpop.f32.mrf.mxu0
      %v650 = vadd.f32 0.0, %v649
      %v651 = vpop.f32.mrf.mxu0
      %652 = vmatprep.mubr.f32.mxu0 %v377
      %653 = vmatmul.mubr.f32.gmra.mxu0 %v220
      %v654 = vpop.f32.mrf.mxu0
      %v655 = vadd.f32 0.0, %v654
      %v656 = vpop.f32.mrf.mxu0
      %657 = vmatprep.mubr.f32.mxu0 %v380
      %658 = vmatmul.mubr.f32.gmra.mxu0 %v222
      %v659 = vpop.f32.mrf.mxu0
      %v660 = vadd.f32 0.0, %v659
      %v661 = vpop.f32.mrf.mxu0
      %662 = vmatprep.mubr.f32.mxu0 %v383
      %663 = vmatmul.mubr.f32.gmra.mxu0 %v224
      %v664 = vpop.f32.mrf.mxu0
      %v665 = vadd.f32 0.0, %v664
      %v666 = vpop.f32.mrf.mxu0
      %667 = vmatprep.mubr.f32.mxu0 %v386
      %668 = vmatmul.mubr.f32.gmra.mxu0 %v226
      %v669 = vpop.f32.mrf.mxu0
      %v670 = vadd.f32 0.0, %v669
      %v671 = vpop.f32.mrf.mxu0
      %672 = vmatprep.mubr.f32.mxu0 %v389
      %673 = vmatmul.mubr.f32.gmra.mxu0 %v228
      %v674 = vpop.f32.mrf.mxu0
      %v675 = vadd.f32 0.0, %v674
      %v676 = vpop.f32.mrf.mxu0
      %677 = vmatprep.mubr.f32.mxu0 %v392
      %678 = vmatmul.mubr.f32.gmra.mxu0 %v230
      %v679 = vpop.f32.mrf.mxu0
      %v680 = vadd.f32 0.0, %v679
      %v681 = vpop.f32.mrf.mxu0
      %682 = vmatprep.mubr.f32.mxu0 %v395
      %683 = vmatmul.mubr.f32.gmra.mxu0 %v232
      %v684 = vpop.f32.mrf.mxu0
      %v685 = vadd.f32 0.0, %v684
      %v686 = vpop.f32.mrf.mxu0
      %687 = vmatprep.mubr.f32.mxu0 %v398
      %688 = vmatmul.mubr.f32.gmra.mxu0 %v234
      %v689 = vpop.f32.mrf.mxu0
      %v690 = vadd.f32 0.0, %v689
      %v691 = vpop.f32.mrf.mxu0
      %692 = vmatprep.mubr.f32.mxu0 %v401
      %693 = vmatmul.mubr.f32.gmra.mxu0 %v236
      %v694 = vpop.f32.mrf.mxu0
      %v695 = vadd.f32 0.0, %v694
      %v696 = vpop.f32.mrf.mxu0
      %697 = vmatprep.mubr.f32.mxu0 %v404
      %698 = vmatmul.mubr.f32.gmra.mxu0 %v238
      %v699 = vpop.f32.mrf.mxu0
      %v700 = vadd.f32 0.0, %v699
      %v701 = vpop.f32.mrf.mxu0
      %702 = vmatprep.mubr.f32.mxu0 %v407
      %703 = vmatmul.mubr.f32.gmra.mxu0 %v240
      %v704 = vpop.f32.mrf.mxu0
      %v705 = vadd.f32 0.0, %v704
      %v706 = vpop.f32.mrf.mxu0
      %707 = vmatprep.mubr.f32.mxu0 %v410
      %708 = vmatmul.mubr.f32.gmra.mxu0 %v242
      %v709 = vpop.f32.mrf.mxu0
      %v710 = vadd.f32 0.0, %v709
      %v711 = vpop.f32.mrf.mxu0
      %712 = vmatprep.mubr.f32.mxu0 %v413
      %713 = vmatmul.mubr.f32.gmra.mxu0 %v244
      %v714 = vpop.f32.mrf.mxu0
      %v715 = vadd.f32 0.0, %v714
      %v716 = vpop.f32.mrf.mxu0
      %717 = vmatprep.mubr.f32.mxu0 %v416
      %718 = vmatmul.mubr.f32.gmra.mxu0 %v246
      %v719 = vpop.f32.mrf.mxu0
      %v720 = vadd.f32 0.0, %v719
      %v721 = vpop.f32.mrf.mxu0
      %722 = vmatprep.mubr.f32.mxu0 %v419
      %723 = vmatmul.mubr.f32.gmra.mxu0 %v248
      %v724 = vpop.f32.mrf.mxu0
      %v725 = vadd.f32 0.0, %v724
      %v726 = vpop.f32.mrf.mxu0
      %727 = vmatprep.mubr.f32.mxu0 %v422
      %728 = vmatmul.mubr.f32.gmra.mxu0 %v250
      %v729 = vpop.f32.mrf.mxu0
      %v730 = vadd.f32 0.0, %v729
      %v731 = vpop.f32.mrf.mxu0
      %732 = vmatprep.mubr.f32.mxu0 %v425
      %733 = vmatmul.mubr.f32.gmra.mxu0 %v252
      %v734 = vpop.f32.mrf.mxu0
      %v735 = vadd.f32 0.0, %v734
      %v736 = vpop.f32.mrf.mxu0
      %737 = vmatprep.mubr.f32.mxu0 %v428
      %738 = vmatmul.mubr.f32.gmra.mxu0 %v254
      %v739 = vpop.f32.mrf.mxu0
      %v740 = vadd.f32 0.0, %v739
      %v741 = vpop.f32.mrf.mxu0
      %742 = vmatprep.mubr.f32.mxu0 %v431
      %743 = vmatmul.mubr.f32.gmra.mxu0 %v256
      %v744 = vpop.f32.mrf.mxu0
      %v745 = vadd.f32 0.0, %v744
      %v746 = vpop.f32.mrf.mxu0
      %747 = vmatprep.mubr.f32.mxu0 %v434
      %748 = vmatmul.mubr.f32.gmra.mxu0 %v258
      %v749 = vpop.f32.mrf.mxu0
      %v750 = vadd.f32 0.0, %v749
      %v751 = vpop.f32.mrf.mxu0
      %752 = vmatprep.mubr.f32.mxu0 %v437
      %753 = vmatmul.mubr.f32.gmra.mxu0 %v260
      %v754 = vpop.f32.mrf.mxu0
      %v755 = vadd.f32 0.0, %v754
      %v756 = vpop.f32.mrf.mxu0
      %757 = vmatprep.mubr.f32.mxu0 %v440
      %758 = vmatmul.mubr.f32.gmra.mxu0 %v262
      %v759 = vpop.f32.mrf.mxu0
      %v760 = vadd.f32 0.0, %v759
      %v761 = vpop.f32.mrf.mxu0
      %762 = vmatprep.mubr.f32.mxu0 %v443
      %763 = vmatmul.mubr.f32.gmra.mxu0 %v264
      %v764 = vpop.f32.mrf.mxu0
      %v765 = vadd.f32 0.0, %v764
      %v766 = vpop.f32.mrf.mxu0
      %767 = vmatprep.mubr.f32.mxu0 %v446
      %768 = vmatmul.mubr.f32.gmra.mxu0 %v266
      %v769 = vpop.f32.mrf.mxu0
      %v770 = vadd.f32 0.0, %v769
      %v771 = vpop.f32.mrf.mxu0
      %772 = vmatprep.mubr.f32.mxu0 %v449
      %773 = vmatmul.mubr.f32.gmra.mxu0 %v268
      %v774 = vpop.f32.mrf.mxu0
      %v775 = vadd.f32 0.0, %v774
      %v776 = vpop.f32.mrf.mxu0
      %777 = vmatprep.mubr.f32.mxu0 %v452
      %778 = vmatmul.mubr.f32.gmra.mxu0 %v270
      %v779 = vpop.f32.mrf.mxu0
      %v780 = vadd.f32 0.0, %v779
      %v781 = vpop.f32.mrf.mxu0
      %782 = vmatprep.mubr.f32.mxu0 %v455
      %783 = vmatmul.mubr.f32.gmra.mxu0 %v272
      %v784 = vpop.f32.mrf.mxu0
      %v785 = vadd.f32 0.0, %v784
      %v786 = vpop.f32.mrf.mxu0
      %787 = vmatprep.mubr.f32.mxu0 %v458
      %788 = vmatmul.mubr.f32.gmra.mxu0 %v274
      %v789 = vpop.f32.mrf.mxu0
      %v790 = vadd.f32 0.0, %v789
      %v791 = vpop.f32.mrf.mxu0
      %792 = vmatprep.mubr.f32.mxu0 %v461
      %793 = vmatmul.mubr.f32.gmra.mxu0 %v276
      %v794 = vpop.f32.mrf.mxu0
      %v795 = vadd.f32 0.0, %v794
      %v796 = vpop.f32.mrf.mxu0
      %797 = vmatprep.mubr.f32.mxu0 %v464
      %798 = vmatmul.mubr.f32.gmra.mxu0 %v278
      %v799 = vpop.f32.mrf.mxu0
      %v800 = vadd.f32 0.0, %v799
      %v801 = vpop.f32.mrf.mxu0
      %802 = vmatprep.mubr.f32.mxu0 %v467
      %803 = vmatmul.mubr.f32.gmra.mxu0 %v280
      %v804 = vpop.f32.mrf.mxu0
      %v805 = vadd.f32 0.0, %v804
      %v806 = vpop.f32.mrf.mxu0
      %807 = vmatprep.mubr.f32.mxu0 %v470
      %808 = vmatmul.mubr.f32.gmra.mxu0 %v282
      %v809 = vpop.f32.mrf.mxu0
      %v810 = vadd.f32 0.0, %v809
      %v811 = vpop.f32.mrf.mxu0
      %812 = vmatprep.mubr.f32.mxu0 %v473
      %813 = vmatmul.mubr.f32.gmra.mxu0 %v284
      %v814 = vpop.f32.mrf.mxu0
      %v815 = vadd.f32 0.0, %v814
      %v816 = vpop.f32.mrf.mxu0
      %817 = vmatprep.mubr.f32.mxu0 %v476
      %818 = vmatmul.mubr.f32.gmra.mxu0 %v286
      %v819 = vpop.f32.mrf.mxu0
      %v820 = vadd.f32 0.0, %v819
      %v821 = vpop.f32.mrf.mxu0
      %822 = vmatprep.mubr.f32.mxu0 %v479
      %823 = vmatmul.mubr.f32.gmra.mxu0 %v288
      %v824 = vpop.f32.mrf.mxu0
      %v825 = vadd.f32 0.0, %v824
      %v826 = vpop.f32.mrf.mxu0
      %827 = vmatprep.mubr.f32.mxu0 %v482
      %828 = vmatmul.mubr.f32.gmra.mxu0 %v290
      %v829 = vpop.f32.mrf.mxu0
      %v830 = vadd.f32 0.0, %v829
      %v831 = vpop.f32.mrf.mxu0
      %832 = vmatprep.mubr.f32.mxu0 %v485
      %833 = vmatmul.mubr.f32.gmra.mxu0 %v292
      %v834 = vpop.f32.mrf.mxu0
      %v835 = vadd.f32 0.0, %v834
      %v836 = vpop.f32.mrf.mxu0
      %837 = vmatprep.mubr.f32.mxu0 %v488
      %838 = vmatmul.mubr.f32.gmra.mxu0 %v294
      %v839 = vpop.f32.mrf.mxu0
      %v840 = vadd.f32 0.0, %v839
      %v841 = vpop.f32.mrf.mxu0
      %842 = vmatprep.mubr.f32.mxu0 %v491
      %843 = vmatmul.mubr.f32.gmra.mxu0 %v296
      %v844 = vpop.f32.mrf.mxu0
      %v845 = vadd.f32 0.0, %v844
      %v846 = vpop.f32.mrf.mxu0
      %847 = vmatprep.mubr.f32.mxu0 %v494
      %848 = vmatmul.mubr.f32.gmra.mxu0 %v298
      %v849 = vpop.f32.mrf.mxu0
      %v850 = vadd.f32 0.0, %v849
      %v851 = vpop.f32.mrf.mxu0
      %852 = vmatprep.mubr.f32.mxu0 %v497
      %853 = vmatmul.mubr.f32.gmra.mxu0 %v300
      %v854 = vpop.f32.mrf.mxu0
      %v855 = vadd.f32 0.0, %v854
      %v856 = vpop.f32.mrf.mxu0
      %857 = vmatprep.mubr.f32.mxu0 %v500
      %858 = vmatmul.mubr.f32.gmra.mxu0 %v302
      %v859 = vpop.f32.mrf.mxu0
      %v860 = vadd.f32 0.0, %v859
      %v861 = vpop.f32.mrf.mxu0
      %862 = vmatprep.mubr.f32.mxu0 %v503
      %863 = vmatmul.mubr.f32.gmra.mxu0 %v304
      %v864 = vpop.f32.mrf.mxu0
      %v865 = vadd.f32 0.0, %v864
      %v866 = vpop.f32.mrf.mxu0
      %867 = vmatprep.mubr.f32.mxu0 %v506
      %868 = vmatmul.mubr.f32.gmra.mxu0 %v306
      %v869 = vpop.f32.mrf.mxu0
      %v870 = vadd.f32 0.0, %v869
      %v871 = vpop.f32.mrf.mxu0
      %872 = vmatprep.mubr.f32.mxu0 %v509
      %873 = vmatmul.mubr.f32.gmra.mxu0 %v308
      %v874 = vpop.f32.mrf.mxu0
      %v875 = vadd.f32 0.0, %v874
      %v876 = vpop.f32.mrf.mxu0
      %877 = vmatprep.mubr.f32.mxu0 %v512
      %878 = vmatmul.mubr.f32.gmra.mxu0 %v310
      %v879 = vpop.f32.mrf.mxu0
      %v880 = vadd.f32 0.0, %v879
      %v881 = vpop.f32.mrf.mxu0
      %882 = vmatprep.mubr.f32.mxu0 %v515
      %883 = vmatmul.mubr.f32.gmra.mxu0 %v312
      %v884 = vpop.f32.mrf.mxu0
      %v885 = vadd.f32 0.0, %v884
      %v886 = vpop.f32.mrf.mxu0
      %887 = vmatprep.mubr.f32.mxu0 %v518
      %888 = vmatmul.mubr.f32.gmra.mxu0 %v314
      %v889 = vpop.f32.mrf.mxu0
      %v890 = vadd.f32 0.0, %v889
      %v891 = vpop.f32.mrf.mxu0
      %892 = vmatprep.mubr.f32.mxu0 %v521
      %893 = vmatmul.mubr.f32.gmra.mxu0 %v316
      %v894 = vpop.f32.mrf.mxu0
      %v895 = vadd.f32 0.0, %v894
      %v896 = vpop.f32.mrf.mxu0
      %897 = vmatprep.mubr.f32.mxu0 %v524
      %898 = vmatmul.mubr.f32.gmra.mxu0 %v318
      %v899 = vpop.f32.mrf.mxu0
      %v900 = vadd.f32 0.0, %v899
      %v901 = vpop.f32.mrf.mxu0
      %902 = vmatprep.mubr.f32.mxu0 %v527
      %903 = vmatmul.mubr.f32.gmra.mxu0 %v320
      %v904 = vpop.f32.mrf.mxu0
      %v905 = vadd.f32 0.0, %v904
      %v906 = vpop.f32.mrf.mxu0
      %907 = vmatprep.mubr.f32.mxu0 %v530
      %908 = vmatmul.mubr.f32.gmra.mxu0 %v322
      %v909 = vpop.f32.mrf.mxu0
      %v910 = vadd.f32 0.0, %v909
      %v911 = vpop.f32.mrf.mxu0
      %912 = vmatprep.mubr.f32.mxu0 %v533
      %913 = vmatmul.mubr.f32.gmra.mxu0 %v324
      %v914 = vpop.f32.mrf.mxu0
      %v915 = vadd.f32 0.0, %v914
      %v916 = vpop.f32.mrf.mxu0
      %917 = vmatprep.mubr.f32.mxu0 %v536
      %918 = vmatmul.mubr.f32.gmra.mxu0 %v326
      %v919 = vpop.f32.mrf.mxu0
      %v920 = vadd.f32 0.0, %v919
      %v921 = vpop.f32.mrf.mxu0
      %922 = vmatprep.mubr.f32.mxu0 %v539
      %923 = vmatmul.mubr.f32.gmra.mxu0 %v328
      %v924 = vpop.f32.mrf.mxu0
      %v925 = vadd.f32 0.0, %v924
      %v926 = vpop.f32.mrf.mxu0
      %927 = vmatprep.mubr.f32.mxu0 %v542
      %928 = vmatmul.mubr.f32.gmra.mxu0 %v330
      %v929 = vpop.f32.mrf.mxu0
      %v930 = vadd.f32 0.0, %v929
      %v931 = vpop.f32.mrf.mxu0
      %932 = vdwg.mxu0
      %v933 = vld [vmem:[%s2] sm:$0x1]
      %v935 = vlaneseq
      %v936 = vshrl.u32 %v935, 7
      %v937 = vsub.s32 0, %v936
      %v938 = vrot.slane %v933, %v937
      %v940 = vmul.f32 %v615, %v938
      %v941 = vmul.f32 %v620, %v938
      %v942 = vmul.f32 %v625, %v938
      %v943 = vmul.f32 %v630, %v938
      %v944 = vmul.f32 %v635, %v938
      %v945 = vmul.f32 %v640, %v938
      %v946 = vmul.f32 %v645, %v938
      %v947 = vmul.f32 %v650, %v938
      %v948 = vmul.f32 %v655, %v938
      %v949 = vmul.f32 %v660, %v938
      %v950 = vmul.f32 %v665, %v938
      %v951 = vmul.f32 %v670, %v938
      %v952 = vmul.f32 %v675, %v938
      %v953 = vmul.f32 %v680, %v938
      %v954 = vmul.f32 %v685, %v938
      %v955 = vmul.f32 %v690, %v938
      %v956 = vmul.f32 %v695, %v938
      %v957 = vmul.f32 %v700, %v938
      %v958 = vmul.f32 %v705, %v938
      %v959 = vmul.f32 %v710, %v938
      %v960 = vmul.f32 %v715, %v938
      %v961 = vmul.f32 %v720, %v938
      %v962 = vmul.f32 %v725, %v938
      %v963 = vmul.f32 %v730, %v938
      %v964 = vmul.f32 %v735, %v938
      %v965 = vmul.f32 %v740, %v938
      %v966 = vmul.f32 %v745, %v938
      %v967 = vmul.f32 %v750, %v938
      %v968 = vmul.f32 %v755, %v938
      %v969 = vmul.f32 %v760, %v938
      %v970 = vmul.f32 %v765, %v938
      %v971 = vmul.f32 %v770, %v938
      %v972 = vmul.f32 %v775, %v938
      %v973 = vmul.f32 %v780, %v938
      %v974 = vmul.f32 %v785, %v938
      %v975 = vmul.f32 %v790, %v938
      %v976 = vmul.f32 %v795, %v938
      %v977 = vmul.f32 %v800, %v938
      %v978 = vmul.f32 %v805, %v938
      %v979 = vmul.f32 %v810, %v938
      %v980 = vmul.f32 %v815, %v938
      %v981 = vmul.f32 %v820, %v938
      %v982 = vmul.f32 %v825, %v938
      %v983 = vmul.f32 %v830, %v938
      %v984 = vmul.f32 %v835, %v938
      %v985 = vmul.f32 %v840, %v938
      %v986 = vmul.f32 %v845, %v938
      %v987 = vmul.f32 %v850, %v938
      %v988 = vmul.f32 %v855, %v938
      %v989 = vmul.f32 %v860, %v938
      %v990 = vmul.f32 %v865, %v938
      %v991 = vmul.f32 %v870, %v938
      %v992 = vmul.f32 %v875, %v938
      %v993 = vmul.f32 %v880, %v938
      %v994 = vmul.f32 %v885, %v938
      %v995 = vmul.f32 %v890, %v938
      %v996 = vmul.f32 %v895, %v938
      %v997 = vmul.f32 %v900, %v938
      %v998 = vmul.f32 %v905, %v938
      %v999 = vmul.f32 %v910, %v938
      %v1000 = vmul.f32 %v915, %v938
      %v1001 = vmul.f32 %v920, %v938
      %v1002 = vmul.f32 %v925, %v938
      %v1003 = vmul.f32 %v930, %v938
      %v1004 = vld [vmem:[%s3] sm:$0x1]
      %v1006 = vlaneseq
      %v1007 = vshrl.u32 %v1006, 7
      %v1008 = vsub.s32 0, %v1007
      %v1009 = vrot.slane %v1004, %v1008
      %v1011 = vadd.f32 %v940, %v1009
      %v1012 = vadd.f32 %v941, %v1009
      %v1013 = vadd.f32 %v942, %v1009
      %v1014 = vadd.f32 %v943, %v1009
      %v1015 = vadd.f32 %v944, %v1009
      %v1016 = vadd.f32 %v945, %v1009
      %v1017 = vadd.f32 %v946, %v1009
      %v1018 = vadd.f32 %v947, %v1009
      %v1019 = vadd.f32 %v948, %v1009
      %v1020 = vadd.f32 %v949, %v1009
      %v1021 = vadd.f32 %v950, %v1009
      %v1022 = vadd.f32 %v951, %v1009
      %v1023 = vadd.f32 %v952, %v1009
      %v1024 = vadd.f32 %v953, %v1009
      %v1025 = vadd.f32 %v954, %v1009
      %v1026 = vadd.f32 %v955, %v1009
      %v1027 = vadd.f32 %v956, %v1009
      %v1028 = vadd.f32 %v957, %v1009
      %v1029 = vadd.f32 %v958, %v1009
      %v1030 = vadd.f32 %v959, %v1009
      %v1031 = vadd.f32 %v960, %v1009
      %v1032 = vadd.f32 %v961, %v1009
      %v1033 = vadd.f32 %v962, %v1009
      %v1034 = vadd.f32 %v963, %v1009
      %v1035 = vadd.f32 %v964, %v1009
      %v1036 = vadd.f32 %v965, %v1009
      %v1037 = vadd.f32 %v966, %v1009
      %v1038 = vadd.f32 %v967, %v1009
      %v1039 = vadd.f32 %v968, %v1009
      %v1040 = vadd.f32 %v969, %v1009
      %v1041 = vadd.f32 %v970, %v1009
      %v1042 = vadd.f32 %v971, %v1009
      %v1043 = vadd.f32 %v972, %v1009
      %v1044 = vadd.f32 %v973, %v1009
      %v1045 = vadd.f32 %v974, %v1009
      %v1046 = vadd.f32 %v975, %v1009
      %v1047 = vadd.f32 %v976, %v1009
      %v1048 = vadd.f32 %v977, %v1009
      %v1049 = vadd.f32 %v978, %v1009
      %v1050 = vadd.f32 %v979, %v1009
      %v1051 = vadd.f32 %v980, %v1009
      %v1052 = vadd.f32 %v981, %v1009
      %v1053 = vadd.f32 %v982, %v1009
      %v1054 = vadd.f32 %v983, %v1009
      %v1055 = vadd.f32 %v984, %v1009
      %v1056 = vadd.f32 %v985, %v1009
      %v1057 = vadd.f32 %v986, %v1009
      %v1058 = vadd.f32 %v987, %v1009
      %v1059 = vadd.f32 %v988, %v1009
      %v1060 = vadd.f32 %v989, %v1009
      %v1061 = vadd.f32 %v990, %v1009
      %v1062 = vadd.f32 %v991, %v1009
      %v1063 = vadd.f32 %v992, %v1009
      %v1064 = vadd.f32 %v993, %v1009
      %v1065 = vadd.f32 %v994, %v1009
      %v1066 = vadd.f32 %v995, %v1009
      %v1067 = vadd.f32 %v996, %v1009
      %v1068 = vadd.f32 %v997, %v1009
      %v1069 = vadd.f32 %v998, %v1009
      %v1070 = vadd.f32 %v999, %v1009
      %v1071 = vadd.f32 %v1000, %v1009
      %v1072 = vadd.f32 %v1001, %v1009
      %v1073 = vadd.f32 %v1002, %v1009
      %v1074 = vadd.f32 %v1003, %v1009
      %v1075 = vmax.f32 %v1011, 0.0
      %v1076 = vmax.f32 %v1012, 0.0
      %v1077 = vmax.f32 %v1013, 0.0
      %v1078 = vmax.f32 %v1014, 0.0
      %v1079 = vmax.f32 %v1015, 0.0
      %v1080 = vmax.f32 %v1016, 0.0
      %v1081 = vmax.f32 %v1017, 0.0
      %v1082 = vmax.f32 %v1018, 0.0
      %v1083 = vmax.f32 %v1019, 0.0
      %v1084 = vmax.f32 %v1020, 0.0
      %v1085 = vmax.f32 %v1021, 0.0
      %v1086 = vmax.f32 %v1022, 0.0
      %v1087 = vmax.f32 %v1023, 0.0
      %v1088 = vmax.f32 %v1024, 0.0
      %v1089 = vmax.f32 %v1025, 0.0
      %v1090 = vmax.f32 %v1026, 0.0
      %v1091 = vmax.f32 %v1027, 0.0
      %v1092 = vmax.f32 %v1028, 0.0
      %v1093 = vmax.f32 %v1029, 0.0
      %v1094 = vmax.f32 %v1030, 0.0
      %v1095 = vmax.f32 %v1031, 0.0
      %v1096 = vmax.f32 %v1032, 0.0
      %v1097 = vmax.f32 %v1033, 0.0
      %v1098 = vmax.f32 %v1034, 0.0
      %v1099 = vmax.f32 %v1035, 0.0
      %v1100 = vmax.f32 %v1036, 0.0
      %v1101 = vmax.f32 %v1037, 0.0
      %v1102 = vmax.f32 %v1038, 0.0
      %v1103 = vmax.f32 %v1039, 0.0
      %v1104 = vmax.f32 %v1040, 0.0
      %v1105 = vmax.f32 %v1041, 0.0
      %v1106 = vmax.f32 %v1042, 0.0
      %v1107 = vmax.f32 %v1043, 0.0
      %v1108 = vmax.f32 %v1044, 0.0
      %v1109 = vmax.f32 %v1045, 0.0
      %v1110 = vmax.f32 %v1046, 0.0
      %v1111 = vmax.f32 %v1047, 0.0
      %v1112 = vmax.f32 %v1048, 0.0
      %v1113 = vmax.f32 %v1049, 0.0
      %v1114 = vmax.f32 %v1050, 0.0
      %v1115 = vmax.f32 %v1051, 0.0
      %v1116 = vmax.f32 %v1052, 0.0
      %v1117 = vmax.f32 %v1053, 0.0
      %v1118 = vmax.f32 %v1054, 0.0
      %v1119 = vmax.f32 %v1055, 0.0
      %v1120 = vmax.f32 %v1056, 0.0
      %v1121 = vmax.f32 %v1057, 0.0
      %v1122 = vmax.f32 %v1058, 0.0
      %v1123 = vmax.f32 %v1059, 0.0
      %v1124 = vmax.f32 %v1060, 0.0
      %v1125 = vmax.f32 %v1061, 0.0
      %v1126 = vmax.f32 %v1062, 0.0
      %v1127 = vmax.f32 %v1063, 0.0
      %v1128 = vmax.f32 %v1064, 0.0
      %v1129 = vmax.f32 %v1065, 0.0
      %v1130 = vmax.f32 %v1066, 0.0
      %v1131 = vmax.f32 %v1067, 0.0
      %v1132 = vmax.f32 %v1068, 0.0
      %v1133 = vmax.f32 %v1069, 0.0
      %v1134 = vmax.f32 %v1070, 0.0
      %v1135 = vmax.f32 %v1071, 0.0
      %v1136 = vmax.f32 %v1072, 0.0
      %v1137 = vmax.f32 %v1073, 0.0
      %v1138 = vmax.f32 %v1074, 0.0
      %vm1139 = vcmask 130048
      %1140 = vst.msk [vmem:[%s202] sm:$0xff] %vm1139, %v1075
      %1141 = vst.msk [vmem:[%s202 + $0x8] sm:$0xff] %vm1139, %v1076
      %1142 = vst.msk [vmem:[%s202 + $0x10] sm:$0xff] %vm1139, %v1077
      %1143 = vst.msk [vmem:[%s202 + $0x18] sm:$0xff] %vm1139, %v1078
      %1144 = vst.msk [vmem:[%s202 + $0x20] sm:$0xff] %vm1139, %v1079
      %1145 = vst.msk [vmem:[%s202 + $0x28] sm:$0xff] %vm1139, %v1080
      %1146 = vst.msk [vmem:[%s202 + $0x30] sm:$0xff] %vm1139, %v1081
      %1147 = vst.msk [vmem:[%s202 + $0x38] sm:$0xff] %vm1139, %v1082
      %1148 = vst.msk [vmem:[%s202 + $0x40] sm:$0xff] %vm1139, %v1083
      %1149 = vst.msk [vmem:[%s202 + $0x48] sm:$0xff] %vm1139, %v1084
      %1150 = vst.msk [vmem:[%s202 + $0x50] sm:$0xff] %vm1139, %v1085
      %1151 = vst.msk [vmem:[%s202 + $0x58] sm:$0xff] %vm1139, %v1086
      %1152 = vst.msk [vmem:[%s202 + $0x60] sm:$0xff] %vm1139, %v1087
      %1153 = vst.msk [vmem:[%s202 + $0x68] sm:$0xff] %vm1139, %v1088
      %1154 = vst.msk [vmem:[%s202 + $0x70] sm:$0xff] %vm1139, %v1089
      %1155 = vst.msk [vmem:[%s202 + $0x78] sm:$0xff] %vm1139, %v1090
      %1156 = vst.msk [vmem:[%s202 + $0x80] sm:$0xff] %vm1139, %v1091
      %1157 = vst.msk [vmem:[%s202 + $0x88] sm:$0xff] %vm1139, %v1092
      %1158 = vst.msk [vmem:[%s202 + $0x90] sm:$0xff] %vm1139, %v1093
      %1159 = vst.msk [vmem:[%s202 + $0x98] sm:$0xff] %vm1139, %v1094
      %1160 = vst.msk [vmem:[%s202 + $0xa0] sm:$0xff] %vm1139, %v1095
      %1161 = vst.msk [vmem:[%s202 + $0xa8] sm:$0xff] %vm1139, %v1096
      %1162 = vst.msk [vmem:[%s202 + $0xb0] sm:$0xff] %vm1139, %v1097
      %1163 = vst.msk [vmem:[%s202 + $0xb8] sm:$0xff] %vm1139, %v1098
      %1164 = vst.msk [vmem:[%s202 + $0xc0] sm:$0xff] %vm1139, %v1099
      %1165 = vst.msk [vmem:[%s202 + $0xc8] sm:$0xff] %vm1139, %v1100
      %1166 = vst.msk [vmem:[%s202 + $0xd0] sm:$0xff] %vm1139, %v1101
      %1167 = vst.msk [vmem:[%s202 + $0xd8] sm:$0xff] %vm1139, %v1102
      %1168 = vst.msk [vmem:[%s202 + $0xe0] sm:$0xff] %vm1139, %v1103
      %1169 = vst.msk [vmem:[%s202 + $0xe8] sm:$0xff] %vm1139, %v1104
      %1170 = vst.msk [vmem:[%s202 + $0xf0] sm:$0xff] %vm1139, %v1105
      %1171 = vst.msk [vmem:[%s202 + $0xf8] sm:$0xff] %vm1139, %v1106
      %1172 = vst.msk [vmem:[%s202 + $0x100] sm:$0xff] %vm1139, %v1107
      %1173 = vst.msk [vmem:[%s202 + $0x108] sm:$0xff] %vm1139, %v1108
      %1174 = vst.msk [vmem:[%s202 + $0x110] sm:$0xff] %vm1139, %v1109
      %1175 = vst.msk [vmem:[%s202 + $0x118] sm:$0xff] %vm1139, %v1110
      %1176 = vst.msk [vmem:[%s202 + $0x120] sm:$0xff] %vm1139, %v1111
      %1177 = vst.msk [vmem:[%s202 + $0x128] sm:$0xff] %vm1139, %v1112
      %1178 = vst.msk [vmem:[%s202 + $0x130] sm:$0xff] %vm1139, %v1113
      %1179 = vst.msk [vmem:[%s202 + $0x138] sm:$0xff] %vm1139, %v1114
      %1180 = vst.msk [vmem:[%s202 + $0x140] sm:$0xff] %vm1139, %v1115
      %1181 = vst.msk [vmem:[%s202 + $0x148] sm:$0xff] %vm1139, %v1116
      %1182 = vst.msk [vmem:[%s202 + $0x150] sm:$0xff] %vm1139, %v1117
      %1183 = vst.msk [vmem:[%s202 + $0x158] sm:$0xff] %vm1139, %v1118
      %1184 = vst.msk [vmem:[%s202 + $0x160] sm:$0xff] %vm1139, %v1119
      %1185 = vst.msk [vmem:[%s202 + $0x168] sm:$0xff] %vm1139, %v1120
      %1186 = vst.msk [vmem:[%s202 + $0x170] sm:$0xff] %vm1139, %v1121
      %1187 = vst.msk [vmem:[%s202 + $0x178] sm:$0xff] %vm1139, %v1122
      %1188 = vst.msk [vmem:[%s202 + $0x180] sm:$0xff] %vm1139, %v1123
      %1189 = vst.msk [vmem:[%s202 + $0x188] sm:$0xff] %vm1139, %v1124
      %1190 = vst.msk [vmem:[%s202 + $0x190] sm:$0xff] %vm1139, %v1125
      %1191 = vst.msk [vmem:[%s202 + $0x198] sm:$0xff] %vm1139, %v1126
      %1192 = vst.msk [vmem:[%s202 + $0x1a0] sm:$0xff] %vm1139, %v1127
      %1193 = vst.msk [vmem:[%s202 + $0x1a8] sm:$0xff] %vm1139, %v1128
      %1194 = vst.msk [vmem:[%s202 + $0x1b0] sm:$0xff] %vm1139, %v1129
      %1195 = vst.msk [vmem:[%s202 + $0x1b8] sm:$0xff] %vm1139, %v1130
      %1196 = vst.msk [vmem:[%s202 + $0x1c0] sm:$0xff] %vm1139, %v1131
      %1197 = vst.msk [vmem:[%s202 + $0x1c8] sm:$0xff] %vm1139, %v1132
      %1198 = vst.msk [vmem:[%s202 + $0x1d0] sm:$0xff] %vm1139, %v1133
      %1199 = vst.msk [vmem:[%s202 + $0x1d8] sm:$0xff] %vm1139, %v1134
      %1200 = vst.msk [vmem:[%s202 + $0x1e0] sm:$0xff] %vm1139, %v1135
      %1201 = vst.msk [vmem:[%s202 + $0x1e8] sm:$0xff] %vm1139, %v1136
      %1202 = vst.msk [vmem:[%s202 + $0x1f0] sm:$0xff] %vm1139, %v1137
      %1203 = vst.msk [vmem:[%s202 + $0x1f8] sm:$0xff] %vm1139, %v1138
      %s1204 = smul.u32 64, %s15
      %p1205 = scmp.lt.s32.totalorder %s1204, 255
      %s1206 = scalar_select %p1205, %s1204, 255
      %s1207 = smul.addr %s1206, 8
      %s1208 = scalar_lea.vmem %s4, %s1207
      // Predicated region
      $region37: #{tpu_custom_call.1} parent=35 // pred_check
        %p1209 = pneg %p122
      $region38: #{tpu_custom_call.1} parent=35 // pred_check_branch
        %1211 = sbr.rel (%p1209) target = $region40
      $region39: #{tpu_custom_call.1} parent=35 // pred_region
        %s1212 = smul.u32 64, %s15
      $region40: #{tpu_custom_call.1} parent=35 // pred_fallthru
        _
    $region36: #{tpu_custom_call.1} parent=5 // pred_fallthru
      _
    %p1213 = scmp.le.s32.totalorder 2, %s10
    // Predicated region
    $region41: #{tpu_custom_call.1} parent=5 // pred_check
      %p1214 = pneg %p1213
    $region42: #{tpu_custom_call.1} parent=5 // pred_check_branch
      %1216 = sbr.rel (%p1214) target = $region44
    $region43: #{tpu_custom_call.1} parent=5 // pred_region
      %s1217 = ssub.s32 %s10, 2
      // Predicated region
      $region45: #{tpu_custom_call.1} parent=43 // pred_check
        %p1218 = pneg %p128
      $region46: #{tpu_custom_call.1} parent=43 // pred_check_branch
        %1220 = sbr.rel (%p1218) target = $region48
      $region47: #{tpu_custom_call.1} parent=43 // pred_region
        %s1221 = smul.u32 64, %s16
        %p1222 = scmp.lt.s32.totalorder %s1221, 255
        %s1223 = scalar_select %p1222, %s1221, 255
        %s1224 = smul.addr %s1223, 8
        %s1225 = scalar_lea.vmem %s4, %s1224
      $region48: #{tpu_custom_call.1} parent=43 // pred_fallthru
        _
    $region44: #{tpu_custom_call.1} parent=5 // pred_fallthru
      _
  $region6: #{tpu_custom_call.1} parent=0 // loop_footer
    %s14 = sadd.s32 1, %s10
  $region7: #{tpu_custom_call.1} parent=0 // loop_footer_branch
    %9 = sbr.rel target = $region3
  $region8: #{tpu_custom_call.1} parent=0 // loop_exit
    _

</llo_original>
